<compile_context>
chip_gen: v6e
topology: v6e:2x2x1
jax: 0.10.0
libtpu: 0.0.40
codegen_flags: <defaults>
</compile_context>

<pallas_src>
import functools

import jax
import jax.numpy as jnp
from jax.experimental import pallas as pl
from jax.experimental.pallas import tpu as pltpu


def _round_up(n, m):
    return ((n + m - 1) // m) * m


def _domainbed_mlp_kernel(x_ref,
                          w_in_ref, b_in_ref,
                          w_h_ref, b_h_ref,
                          w_out_ref, b_out_ref,
                          w_cls_ref, b_cls_ref,
                          o_ref):
    """Featurizer MLP + linear classifier for one batch tile (lane-padded)."""
    cdt = w_in_ref.dtype  # matmul compute dtype (f32 or bf16); accumulate f32

    x = x_ref[...]

    # featurizer.input : Linear(n_inputs, width) -> dropout(p=0) -> relu
    h = jnp.dot(x, w_in_ref[...], preferred_element_type=jnp.float32)
    h = jnp.maximum(h + b_in_ref[...], 0.0)

    # featurizer.hiddens[0] : Linear(width, width) -> dropout(p=0) -> relu
    h = jnp.dot(h.astype(cdt), w_h_ref[...], preferred_element_type=jnp.float32)
    h = jnp.maximum(h + b_h_ref[...], 0.0)

    # featurizer.output : Linear(width, width)   (no relu in DomainBed MLP)
    h = jnp.dot(h.astype(cdt), w_out_ref[...], preferred_element_type=jnp.float32)
    h = h + b_out_ref[...]

    # classifier : Linear(width, num_classes)  (output lane-padded to 128)
    logits = jnp.dot(h.astype(cdt), w_cls_ref[...],
                     preferred_element_type=jnp.float32)
    o_ref[...] = (logits + b_cls_ref[...]).astype(o_ref.dtype)


def prepare_params(params, compute_dtype=jnp.float32):
    """Zero-pad all lane (output-feature) dims to multiples of 128 and cast
    weights to the matmul compute dtype.  Done ONCE, outside the hot path.

    Zero padding of weight columns/rows and bias entries keeps the valid
    output columns bit-identical to the unpadded computation.
    """
    w_in, b_in, w_h, b_h, w_out, b_out, w_cls, b_cls = params
    n_in, width = w_in.shape
    num_classes = w_cls.shape[1]
    wp = _round_up(width, 128)
    cp = _round_up(num_classes, 128)

    def pad(a, rows, cols):
        return jnp.pad(a, ((0, rows - a.shape[0]), (0, cols - a.shape[1])))

    padded = (
        pad(w_in,  n_in, wp).astype(compute_dtype),
        pad(b_in,  1,    wp).astype(jnp.float32),
        pad(w_h,   wp,   wp).astype(compute_dtype),
        pad(b_h,   1,    wp).astype(jnp.float32),
        pad(w_out, wp,   wp).astype(compute_dtype),
        pad(b_out, 1,    wp).astype(jnp.float32),
        pad(w_cls, wp,   cp).astype(compute_dtype),
        pad(b_cls, 1,    cp).astype(jnp.float32),
    )
    return padded


@functools.partial(jax.jit, static_argnames=("num_classes", "batch_tile"))
def domainbed_net_forward(x, padded_params, *, num_classes, batch_tile=None):
    """x: [B, n_inputs] float32 -> logits [B, num_classes] float32."""
    B, n_in = x.shape
    w_in = padded_params[0]
    w_cls = padded_params[6]
    cp = w_cls.shape[1]            # lane-padded classifier width (multiple of 128)
    compute_dtype = w_in.dtype

    # Cast x once in the wrapper so the HBM stream is already in compute dtype.
    x = x.astype(compute_dtype)

    # Batch tile: whole batch in one block for small B (no grid overhead),
    # otherwise 512-row (128-multiple) tiles -> full MXU rows, low step
    # overhead, and B/batch_tile >= 2 keeps both v7x TensorCores busy.
    if batch_tile is None:
        batch_tile = B if B <= 512 else 512
    assert B % batch_tile == 0, "batch must be a multiple of batch_tile"
    assert batch_tile == B or batch_tile % 8 == 0, "batch_tile must be 8-aligned"
    grid = (B // batch_tile,)

    # Weights/biases are KB-scale: give every grid step the full parameter
    # block.  index_map returns block (0,0) for all steps, so each parameter
    # is DMA'd once and stays resident in VMEM across the grid.
    def const_spec(shape):
        return pl.BlockSpec(shape, lambda i: tuple(0 for _ in shape))

    specs = [pl.BlockSpec((batch_tile, n_in), lambda i: (i, 0))]  # x tile
    specs += [const_spec(p.shape) for p in padded_params]

    out_padded = pl.pallas_call(
        _domainbed_mlp_kernel,
        out_shape=jax.ShapeDtypeStruct((B, cp), jnp.float32),
        grid_spec=pltpu.PrefetchScalarGridSpec(
            num_scalar_prefetch=0,
            grid=grid,
            in_specs=specs,
            out_specs=pl.BlockSpec((batch_tile, cp), lambda i: (i, 0)),
        ),
        compiler_params=pltpu.CompilerParams(
            dimension_semantics=("parallel",)),
    )(x, *padded_params)

    # Drop the zero-padded logit lanes.
    return out_padded[:, :num_classes]


def _reference_forward(x, params):
    """Plain-JAX reference mirroring the PyTorch forward semantics."""
    w_in, b_in, w_h, b_h, w_out, b_out, w_cls, b_cls = params
    h = jnp.maximum(x @ w_in + b_in, 0.0)
    h = jnp.maximum(h @ w_h + b_h, 0.0)
    h = h @ w_out + b_out
    return h @ w_cls + b_cls


def init_params(key, n_inputs, mlp_width, num_classes):
    """Deterministic synthetic parameter init (shapes match nn.Linear layers)."""
    ks = jax.random.split(key, 8)

    def linear(kw, kb, fan_in, fan_out):
        # PyTorch nn.Linear default: U(-1/sqrt(fan_in), 1/sqrt(fan_in))
        bound = 1.0 / jnp.sqrt(fan_in)
        w = jax.random.uniform(kw, (fan_in, fan_out), jnp.float32, -bound, bound)
        b = jax.random.uniform(kb, (1, fan_out), jnp.float32, -bound, bound)
        return w, b

    w_in, b_in = linear(ks[0], ks[1], n_inputs, mlp_width)
    w_h, b_h = linear(ks[2], ks[3], mlp_width, mlp_width)
    w_out, b_out = linear(ks[4], ks[5], mlp_width, mlp_width)
    w_cls, b_cls = linear(ks[6], ks[7], mlp_width, num_classes)
    return (w_in, b_in, w_h, b_h, w_out, b_out, w_cls, b_cls)


if __name__ == "__main__":
    # Small shapes consistent with the module:
    #   input_shape = (64,) -> MLP featurizer branch
    #   mlp_width   = 32, mlp_depth = 3, num_classes = 8, batch = 16
    B, N_IN, WIDTH, NUM_CLASSES = 16, 64, 32, 8

    key = jax.random.PRNGKey(0)
    kx, kp = jax.random.split(key)
    x = jax.random.normal(kx, (B, N_IN), dtype=jnp.float32)
    params = init_params(kp, N_IN, WIDTH, NUM_CLASSES)
    ref = _reference_forward(x, params)

    # --- f32 path (default): single whole-batch block, exact vs reference ---
    padded_f32 = prepare_params(params, jnp.float32)
    out = jax.block_until_ready(
        domainbed_net_forward(x, padded_f32, num_classes=NUM_CLASSES))
    assert out.shape == (B, NUM_CLASSES)
    assert jnp.allclose(out, ref, atol=1e-4, rtol=1e-4), "f32 mismatch vs reference"

    # --- tiled path: larger batch exercising the multi-step grid ---
    x_big = jax.random.normal(jax.random.PRNGKey(1), (256, N_IN), jnp.float32)
    out_big = jax.block_until_ready(
        domainbed_net_forward(x_big, padded_f32, num_classes=NUM_CLASSES,
                              batch_tile=128))
    ref_big = _reference_forward(x_big, params)
    assert jnp.allclose(out_big, ref_big, atol=1e-4, rtol=1e-4), "tiled mismatch"

    # --- bf16 matmul path (v6e/v7x recommendation; f32 accumulation) ---
    padded_bf16 = prepare_params(params, jnp.bfloat16)
    out_bf16 = jax.block_until_ready(
        domainbed_net_forward(x, padded_bf16, num_classes=NUM_CLASSES))
    assert jnp.allclose(out_bf16, ref, atol=5e-2, rtol=5e-2), "bf16 mismatch"

    print("KERNEL_OK")
</pallas_src>

<mosaic_0001>
module attributes {stable_mosaic.version = 11 : i64} {
  func.func @_domainbed_mlp_kernel(%arg0: i32, %arg1: memref<16x64xf32, #tpu.memory_space<vmem>>, %arg2: memref<64x128xf32, #tpu.memory_space<vmem>>, %arg3: memref<1x128xf32, #tpu.memory_space<vmem>>, %arg4: memref<128x128xf32, #tpu.memory_space<vmem>>, %arg5: memref<1x128xf32, #tpu.memory_space<vmem>>, %arg6: memref<128x128xf32, #tpu.memory_space<vmem>>, %arg7: memref<1x128xf32, #tpu.memory_space<vmem>>, %arg8: memref<128x128xf32, #tpu.memory_space<vmem>>, %arg9: memref<1x128xf32, #tpu.memory_space<vmem>>, %arg10: memref<16x128xf32, #tpu.memory_space<vmem>>) attributes {dimension_semantics = [#tpu.dimension_semantics<parallel>], iteration_bounds = array<i64: 1>, scalar_prefetch = 0 : i64, scratch_operands = 0 : i64, tpu.core_type = #tpu.core_type<tc>, window_params = [{transform_indices = @transform_0, window_bounds = array<i64: 16, 64>}, {pipeline_mode = #tpu.pipeline_mode<synchronous>, transform_indices = @transform_1, window_bounds = array<i64: 64, 128>}, {pipeline_mode = #tpu.pipeline_mode<synchronous>, transform_indices = @transform_2, window_bounds = array<i64: 1, 128>}, {pipeline_mode = #tpu.pipeline_mode<synchronous>, transform_indices = @transform_3, window_bounds = array<i64: 128, 128>}, {pipeline_mode = #tpu.pipeline_mode<synchronous>, transform_indices = @transform_4, window_bounds = array<i64: 1, 128>}, {pipeline_mode = #tpu.pipeline_mode<synchronous>, transform_indices = @transform_5, window_bounds = array<i64: 128, 128>}, {pipeline_mode = #tpu.pipeline_mode<synchronous>, transform_indices = @transform_6, window_bounds = array<i64: 1, 128>}, {pipeline_mode = #tpu.pipeline_mode<synchronous>, transform_indices = @transform_7, window_bounds = array<i64: 128, 128>}, {pipeline_mode = #tpu.pipeline_mode<synchronous>, transform_indices = @transform_8, window_bounds = array<i64: 1, 128>}, {transform_indices = @transform_9, window_bounds = array<i64: 16, 128>}]} {
    %c0 = arith.constant 0 : index
    %c0_0 = arith.constant 0 : index
    %0 = vector.load %arg1[%c0, %c0_0] : memref<16x64xf32, #tpu.memory_space<vmem>>, vector<16x64xf32>
    %c0_1 = arith.constant 0 : index
    %c0_2 = arith.constant 0 : index
    %1 = vector.load %arg2[%c0_1, %c0_2] : memref<64x128xf32, #tpu.memory_space<vmem>>, vector<64x128xf32>
    %cst = arith.constant dense<0.000000e+00> : vector<16x128xf32>
    %2 = tpu.matmul %0, %1, %cst {dimension_numbers = #tpu.dot_dimension_numbers<[1], [0], [0], [1], [0, 0, 1, 1], [], []>} : vector<16x64xf32>, vector<64x128xf32>, vector<16x128xf32> -> vector<16x128xf32>
    %c0_3 = arith.constant 0 : index
    %c0_4 = arith.constant 0 : index
    %3 = vector.load %arg3[%c0_3, %c0_4] : memref<1x128xf32, #tpu.memory_space<vmem>>, vector<1x128xf32>
    %4 = vector.broadcast %3 : vector<1x128xf32> to vector<16x128xf32>
    %5 = arith.addf %2, %4 : vector<16x128xf32>
    %cst_5 = arith.constant 0.000000e+00 : f32
    %6 = vector.broadcast %cst_5 : f32 to vector<16x128xf32>
    %7 = arith.maximumf %5, %6 : vector<16x128xf32>
    %c0_6 = arith.constant 0 : index
    %c0_7 = arith.constant 0 : index
    %8 = vector.load %arg4[%c0_6, %c0_7] : memref<128x128xf32, #tpu.memory_space<vmem>>, vector<128x128xf32>
    %cst_8 = arith.constant dense<0.000000e+00> : vector<16x128xf32>
    %9 = tpu.matmul %7, %8, %cst_8 {dimension_numbers = #tpu.dot_dimension_numbers<[1], [0], [0], [1], [0, 0, 1, 1], [], []>} : vector<16x128xf32>, vector<128x128xf32>, vector<16x128xf32> -> vector<16x128xf32>
    %c0_9 = arith.constant 0 : index
    %c0_10 = arith.constant 0 : index
    %10 = vector.load %arg5[%c0_9, %c0_10] : memref<1x128xf32, #tpu.memory_space<vmem>>, vector<1x128xf32>
    %11 = vector.broadcast %10 : vector<1x128xf32> to vector<16x128xf32>
    %12 = arith.addf %9, %11 : vector<16x128xf32>
    %cst_11 = arith.constant 0.000000e+00 : f32
    %13 = vector.broadcast %cst_11 : f32 to vector<16x128xf32>
    %14 = arith.maximumf %12, %13 : vector<16x128xf32>
    %c0_12 = arith.constant 0 : index
    %c0_13 = arith.constant 0 : index
    %15 = vector.load %arg6[%c0_12, %c0_13] : memref<128x128xf32, #tpu.memory_space<vmem>>, vector<128x128xf32>
    %cst_14 = arith.constant dense<0.000000e+00> : vector<16x128xf32>
    %16 = tpu.matmul %14, %15, %cst_14 {dimension_numbers = #tpu.dot_dimension_numbers<[1], [0], [0], [1], [0, 0, 1, 1], [], []>} : vector<16x128xf32>, vector<128x128xf32>, vector<16x128xf32> -> vector<16x128xf32>
    %c0_15 = arith.constant 0 : index
    %c0_16 = arith.constant 0 : index
    %17 = vector.load %arg7[%c0_15, %c0_16] : memref<1x128xf32, #tpu.memory_space<vmem>>, vector<1x128xf32>
    %18 = vector.broadcast %17 : vector<1x128xf32> to vector<16x128xf32>
    %19 = arith.addf %16, %18 : vector<16x128xf32>
    %c0_17 = arith.constant 0 : index
    %c0_18 = arith.constant 0 : index
    %20 = vector.load %arg8[%c0_17, %c0_18] : memref<128x128xf32, #tpu.memory_space<vmem>>, vector<128x128xf32>
    %cst_19 = arith.constant dense<0.000000e+00> : vector<16x128xf32>
    %21 = tpu.matmul %19, %20, %cst_19 {dimension_numbers = #tpu.dot_dimension_numbers<[1], [0], [0], [1], [0, 0, 1, 1], [], []>} : vector<16x128xf32>, vector<128x128xf32>, vector<16x128xf32> -> vector<16x128xf32>
    %c0_20 = arith.constant 0 : index
    %c0_21 = arith.constant 0 : index
    %22 = vector.load %arg9[%c0_20, %c0_21] : memref<1x128xf32, #tpu.memory_space<vmem>>, vector<1x128xf32>
    %23 = vector.broadcast %22 : vector<1x128xf32> to vector<16x128xf32>
    %24 = arith.addf %21, %23 : vector<16x128xf32>
    %c0_22 = arith.constant 0 : index
    %c0_23 = arith.constant 0 : index
    %25 = vector.load %arg10[%c0_22, %c0_23] : memref<16x128xf32, #tpu.memory_space<vmem>>, vector<16x128xf32>
    tpu.vector_store %arg10[%c0_22, %c0_23], %24 {strides = array<i32>} : memref<16x128xf32, #tpu.memory_space<vmem>>, vector<16x128xf32>,
    return
  }
  func.func @transform_0(%arg0: i32) -> (i32, i32) {
    %c0_i32 = arith.constant 0 : i32
    %c0_i32_0 = arith.constant 0 : i32
    return %arg0, %c0_i32 : i32, i32
  }
  func.func @transform_1(%arg0: i32) -> (i32, i32) {
    %c0_i32 = arith.constant 0 : i32
    %c0_i32_0 = arith.constant 0 : i32
    %c0_i32_1 = arith.constant 0 : i32
    return %c0_i32, %c0_i32_0 : i32, i32
  }
  func.func @transform_2(%arg0: i32) -> (i32, i32) {
    %c0_i32 = arith.constant 0 : i32
    %c0_i32_0 = arith.constant 0 : i32
    %c0_i32_1 = arith.constant 0 : i32
    return %c0_i32, %c0_i32_0 : i32, i32
  }
  func.func @transform_3(%arg0: i32) -> (i32, i32) {
    %c0_i32 = arith.constant 0 : i32
    %c0_i32_0 = arith.constant 0 : i32
    %c0_i32_1 = arith.constant 0 : i32
    return %c0_i32, %c0_i32_0 : i32, i32
  }
  func.func @transform_4(%arg0: i32) -> (i32, i32) {
    %c0_i32 = arith.constant 0 : i32
    %c0_i32_0 = arith.constant 0 : i32
    %c0_i32_1 = arith.constant 0 : i32
    return %c0_i32, %c0_i32_0 : i32, i32
  }
  func.func @transform_5(%arg0: i32) -> (i32, i32) {
    %c0_i32 = arith.constant 0 : i32
    %c0_i32_0 = arith.constant 0 : i32
    %c0_i32_1 = arith.constant 0 : i32
    return %c0_i32, %c0_i32_0 : i32, i32
  }
  func.func @transform_6(%arg0: i32) -> (i32, i32) {
    %c0_i32 = arith.constant 0 : i32
    %c0_i32_0 = arith.constant 0 : i32
    %c0_i32_1 = arith.constant 0 : i32
    return %c0_i32, %c0_i32_0 : i32, i32
  }
  func.func @transform_7(%arg0: i32) -> (i32, i32) {
    %c0_i32 = arith.constant 0 : i32
    %c0_i32_0 = arith.constant 0 : i32
    %c0_i32_1 = arith.constant 0 : i32
    return %c0_i32, %c0_i32_0 : i32, i32
  }
  func.func @transform_8(%arg0: i32) -> (i32, i32) {
    %c0_i32 = arith.constant 0 : i32
    %c0_i32_0 = arith.constant 0 : i32
    %c0_i32_1 = arith.constant 0 : i32
    return %c0_i32, %c0_i32_0 : i32, i32
  }
  func.func @transform_9(%arg0: i32) -> (i32, i32) {
    %c0_i32 = arith.constant 0 : i32
    %c0_i32_0 = arith.constant 0 : i32
    return %arg0, %c0_i32 : i32, i32
  }
}

</mosaic_0001>

<llo_original>
// kernel: domainbed_net_forward.1
$region0: #{domainbed_net_forward.1}
  #allocation0 [shape = 'u32[]', space=smem, size = 0x4, offset = 0x4, fixed_abs, tag = 'smem constant byte address 0x4 - core index']
  #allocation1 [shape = 'u32[144,128]{1,0:T(1,128)}', space=vmem, size = 0x12000, scoped, tag = 'internal scratch']
  %s0 = inlined_call_operand.hbm [shape: f32[16,64], index: 0, kind: input, shape index: {}]
  %s1 = inlined_call_operand.hbm [shape: f32[64,128], index: 1, kind: input, shape index: {}]
  %s2 = inlined_call_operand.vmem [shape: f32[1,128], index: 2, kind: input, shape index: {}]
  %s3 = inlined_call_operand.hbm [shape: f32[128,128], index: 3, kind: input, shape index: {}]
  %s4 = inlined_call_operand.vmem [shape: f32[1,128], index: 4, kind: input, shape index: {}]
  %s5 = inlined_call_operand.hbm [shape: f32[128,128], index: 5, kind: input, shape index: {}]
  %s6 = inlined_call_operand.vmem [shape: f32[1,128], index: 6, kind: input, shape index: {}]
  %s7 = inlined_call_operand.hbm [shape: f32[128,128], index: 7, kind: input, shape index: {}]
  %s8 = inlined_call_operand.vmem [shape: f32[1,128], index: 8, kind: input, shape index: {}]
  %s9 = inlined_call_operand.vmem [shape: f32[16,128], index: 9, kind: output, shape index: {}]
  %s10 = sld [smem:[#allocation0]]
  $region66: #{domainbed_net_forward.1} parent=0
    _
  %s12 = ssub.s32 1, %s10
  %s13 = scalar_select 0, %s12, %s10
  $region1: #{domainbed_net_forward.1} parent=0
    #allocation2 [shape = 'u8[8192]{0}', space=vmem, size = 0x2000, scoped, tag = 'input window, operand 0, single buffered']
    #allocation3 [shape = 's32[1]{0}', space=sflag, size = 0x4, scoped, tag = 'scoped memory for domainbed_net_forward.1']
    #allocation4 [shape = 'u8[32768]{0}', space=vmem, size = 0x8000, scoped, tag = 'input window, operand 1, single buffered']
    #allocation5 [shape = 's32[1]{0}', space=sflag, size = 0x4, scoped, tag = 'scoped memory for domainbed_net_forward.1']
    #allocation6 [shape = 'u8[65536]{0}', space=vmem, size = 0x10000, scoped, tag = 'input window, operand 3, single buffered']
    #allocation7 [shape = 'u8[65536]{0}', space=vmem, size = 0x10000, scoped, tag = 'input window, operand 5, single buffered']
    #allocation8 [shape = 's32[1]{0}', space=sflag, size = 0x4, scoped, tag = 'scoped memory for domainbed_net_forward.1']
    #allocation9 [shape = 'u8[65536]{0}', space=vmem, size = 0x10000, scoped, tag = 'input window, operand 7, single buffered']
    %14 = vsyncpa [#allocation3], 0
    %15 = vsyncpa [#allocation5], 0
    %16 = vsyncpa [#allocation8], 0
    // Predicated region
    $region2: #{domainbed_net_forward.1} parent=1 // pred_check
      _
    $region3: #{domainbed_net_forward.1} parent=1 // pred_check_branch
      %18 = sbr.rel (0) target = $region5
    $region4: #{domainbed_net_forward.1} parent=1 // pred_region
      %s20 = ssub.s32 256, 256
      %21 = vsyncadd [#allocation3], %s20
      %s22 = sshll.u32 [#allocation2], 4
      %s23 = int_to_ptr.vmem [resolvable:$true] %s22
      %28 = dma.hbm_to_vmem [thread:$0]  %s0, 256, %s23, [#allocation3], 128, 128, 8
    $region5: #{domainbed_net_forward.1} parent=1 // pred_fallthru
      _
    // Predicated region
    $region6: #{domainbed_net_forward.1} parent=1 // pred_check
      _
    $region7: #{domainbed_net_forward.1} parent=1 // pred_check_branch
      %30 = sbr.rel (0) target = $region9
    $region8: #{domainbed_net_forward.1} parent=1 // pred_region
      %s32 = ssub.s32 1024, 1024
      %33 = vsyncadd [#allocation5], %s32
      %s34 = sshll.u32 [#allocation4], 4
      %s35 = int_to_ptr.vmem [resolvable:$true] %s34
      %40 = dma.hbm_to_vmem [thread:$0]  %s1, 1024, %s35, [#allocation5], 128, 128, 8
    $region9: #{domainbed_net_forward.1} parent=1 // pred_fallthru
      _
    // Predicated region
    $region10: #{domainbed_net_forward.1} parent=1 // pred_check
      _
    $region11: #{domainbed_net_forward.1} parent=1 // pred_check_branch
      %42 = sbr.rel (0) target = $region13
    $region12: #{domainbed_net_forward.1} parent=1 // pred_region
      _
    $region13: #{domainbed_net_forward.1} parent=1 // pred_fallthru
      _
    // Predicated region
    $region14: #{domainbed_net_forward.1} parent=1 // pred_check
      _
    $region15: #{domainbed_net_forward.1} parent=1 // pred_check_branch
      %44 = sbr.rel (0) target = $region17
    $region16: #{domainbed_net_forward.1} parent=1 // pred_region
      %s46 = ssub.s32 2048, 2048
      %47 = vsyncadd [#allocation5], %s46
      %s48 = sshll.u32 [#allocation6], 4
      %s49 = int_to_ptr.vmem [resolvable:$true] %s48
      %54 = dma.hbm_to_vmem [thread:$0]  %s3, 2048, %s49, [#allocation5], 128, 128, 8
    $region17: #{domainbed_net_forward.1} parent=1 // pred_fallthru
      _
    // Predicated region
    $region18: #{domainbed_net_forward.1} parent=1 // pred_check
      _
    $region19: #{domainbed_net_forward.1} parent=1 // pred_check_branch
      %56 = sbr.rel (0) target = $region21
    $region20: #{domainbed_net_forward.1} parent=1 // pred_region
      _
    $region21: #{domainbed_net_forward.1} parent=1 // pred_fallthru
      _
    // Predicated region
    $region22: #{domainbed_net_forward.1} parent=1 // pred_check
      _
    $region23: #{domainbed_net_forward.1} parent=1 // pred_check_branch
      %58 = sbr.rel (0) target = $region25
    $region24: #{domainbed_net_forward.1} parent=1 // pred_region
      %s60 = ssub.s32 2048, 2048
      %61 = vsyncadd [#allocation8], %s60
      %s62 = sshll.u32 [#allocation7], 4
      %s63 = int_to_ptr.vmem [resolvable:$true] %s62
      %68 = dma.hbm_to_vmem [thread:$0]  %s5, 2048, %s63, [#allocation8], 128, 128, 8
    $region25: #{domainbed_net_forward.1} parent=1 // pred_fallthru
      _
    // Predicated region
    $region26: #{domainbed_net_forward.1} parent=1 // pred_check
      _
    $region27: #{domainbed_net_forward.1} parent=1 // pred_check_branch
      %70 = sbr.rel (0) target = $region29
    $region28: #{domainbed_net_forward.1} parent=1 // pred_region
      _
    $region29: #{domainbed_net_forward.1} parent=1 // pred_fallthru
      _
    // Predicated region
    $region30: #{domainbed_net_forward.1} parent=1 // pred_check
      _
    $region31: #{domainbed_net_forward.1} parent=1 // pred_check_branch
      %72 = sbr.rel (0) target = $region33
    $region32: #{domainbed_net_forward.1} parent=1 // pred_region
      %s74 = ssub.s32 2048, 2048
      %75 = vsyncadd [#allocation8], %s74
      %s76 = sshll.u32 [#allocation9], 4
      %s77 = int_to_ptr.vmem [resolvable:$true] %s76
      %82 = dma.hbm_to_vmem [thread:$0]  %s7, 2048, %s77, [#allocation8], 128, 128, 8
    $region33: #{domainbed_net_forward.1} parent=1 // pred_fallthru
      _
    // Predicated region
    $region34: #{domainbed_net_forward.1} parent=1 // pred_check
      _
    $region35: #{domainbed_net_forward.1} parent=1 // pred_check_branch
      %84 = sbr.rel (0) target = $region37
    $region36: #{domainbed_net_forward.1} parent=1 // pred_region
      _
    $region37: #{domainbed_net_forward.1} parent=1 // pred_fallthru
      _
    // Predicated region
    $region38: #{domainbed_net_forward.1} parent=1 // pred_check
      _
    $region39: #{domainbed_net_forward.1} parent=1 // pred_check_branch
      %86 = sbr.rel (0) target = $region41
    $region40: #{domainbed_net_forward.1} parent=1 // pred_region
      %87 = dma.done [#allocation3], 256
    $region41: #{domainbed_net_forward.1} parent=1 // pred_fallthru
      _
    // Predicated region
    $region42: #{domainbed_net_forward.1} parent=1 // pred_check
      _
    $region43: #{domainbed_net_forward.1} parent=1 // pred_check_branch
      %89 = sbr.rel (0) target = $region45
    $region44: #{domainbed_net_forward.1} parent=1 // pred_region
      %90 = dma.done [#allocation5], 1024
    $region45: #{domainbed_net_forward.1} parent=1 // pred_fallthru
      _
    // Predicated region
    $region46: #{domainbed_net_forward.1} parent=1 // pred_check
      _
    $region47: #{domainbed_net_forward.1} parent=1 // pred_check_branch
      %92 = sbr.rel (0) target = $region49
    $region48: #{domainbed_net_forward.1} parent=1 // pred_region
      %93 = dma.done [#allocation5], 2048
    $region49: #{domainbed_net_forward.1} parent=1 // pred_fallthru
      _
    // Predicated region
    $region50: #{domainbed_net_forward.1} parent=1 // pred_check
      _
    $region51: #{domainbed_net_forward.1} parent=1 // pred_check_branch
      %95 = sbr.rel (0) target = $region53
    $region52: #{domainbed_net_forward.1} parent=1 // pred_region
      %96 = dma.done [#allocation8], 2048
    $region53: #{domainbed_net_forward.1} parent=1 // pred_fallthru
      _
    // Predicated region
    $region54: #{domainbed_net_forward.1} parent=1 // pred_check
      _
    $region55: #{domainbed_net_forward.1} parent=1 // pred_check_branch
      %98 = sbr.rel (0) target = $region57
    $region56: #{domainbed_net_forward.1} parent=1 // pred_region
      %99 = dma.done [#allocation8], 2048
    $region57: #{domainbed_net_forward.1} parent=1 // pred_fallthru
      _
    %v100 = vld [vmem:[#allocation2] sm:$0xff]
    %v101 = vld [vmem:[#allocation2 + $0x8] sm:$0xff]
    %v102 = vld [vmem:[#allocation4] sm:$0xff]
    %v103 = vld [vmem:[#allocation4 + $0x8] sm:$0xff]
    %v104 = vld [vmem:[#allocation4 + $0x10] sm:$0xff]
    %v105 = vld [vmem:[#allocation4 + $0x18] sm:$0xff]
    %v106 = vld [vmem:[#allocation4 + $0x20] sm:$0xff]
    %v107 = vld [vmem:[#allocation4 + $0x28] sm:$0xff]
    %v108 = vld [vmem:[#allocation4 + $0x30] sm:$0xff]
    %v109 = vld [vmem:[#allocation4 + $0x38] sm:$0xff]
    %v110 = vld [vmem:[%s2] sm:$0x1]
    %v112 = vlaneseq
    %v113 = vshrl.u32 %v112, 7
    %v114 = vsub.s32 0, %v113
    %v115 = vrot.slane %v110, %v114
    %vm117 = vcmask 523264
    %v119 = vsel %vm117, %v100, 0
    %v122 = vsel %vm117, %v101, 0
    %124 = vmatprep.subr.mxu0 0.0
    %125 = vmatpush1.msra.mxu0 0.0
    %126 = vmatprep.subr.mxu0 0.0
    %127 = vmatpush1.msra.mxu0 0.0
    %128 = vmatprep.subr.mxu0 0.0
    %129 = vmatpush1.msra.mxu0 0.0
    %130 = vmatprep.subr.mxu0 0.0
    %131 = vmatpush1.msra.mxu0 0.0
    %132 = vmatprep.subr.mxu0 0.0
    %133 = vmatpush1.msra.mxu0 0.0
    %134 = vmatprep.subr.mxu0 0.0
    %135 = vmatpush1.msra.mxu0 0.0
    %136 = vmatprep.subr.mxu0 0.0
    %137 = vmatpush1.msra.mxu0 0.0
    %138 = vmatprep.subr.mxu0 0.0
    %139 = vmatpush1.msra.mxu0 0.0
    %140 = vmatprep.subr.mxu0 0.0
    %141 = vmatpush1.msra.mxu0 %v109
    %142 = vmatprep.subr.mxu0 0.0
    %143 = vmatpush1.msra.mxu0 %v108
    %144 = vmatprep.subr.mxu0 0.0
    %145 = vmatpush1.msra.mxu0 %v107
    %146 = vmatprep.subr.mxu0 0.0
    %147 = vmatpush1.msra.mxu0 %v106
    %148 = vmatprep.subr.mxu0 0.0
    %149 = vmatpush1.msra.mxu0 %v105
    %150 = vmatprep.subr.mxu0 0.0
    %151 = vmatpush1.msra.mxu0 %v104
    %152 = vmatprep.subr.mxu0 0.0
    %153 = vmatpush1.msra.mxu0 %v103
    %154 = vmatprep.subr.mxu0 0.0
    %155 = vmatpush1.msra.mxu0 %v102
    %156 = vmatprep.subr.mxu0 0.0
    %157 = vmatpush2.msra.mxu0 0.0
    %158 = vmatprep.subr.mxu0 0.0
    %159 = vmatpush2.msra.mxu0 0.0
    %160 = vmatprep.subr.mxu0 0.0
    %161 = vmatpush2.msra.mxu0 0.0
    %162 = vmatprep.subr.mxu0 0.0
    %163 = vmatpush2.msra.mxu0 0.0
    %164 = vmatprep.subr.mxu0 0.0
    %165 = vmatpush2.msra.mxu0 0.0
    %166 = vmatprep.subr.mxu0 0.0
    %167 = vmatpush2.msra.mxu0 0.0
    %168 = vmatprep.subr.mxu0 0.0
    %169 = vmatpush2.msra.mxu0 0.0
    %170 = vmatprep.subr.mxu0 0.0
    %171 = vmatpush2.msra.mxu0 0.0
    %172 = vmatprep.subr.mxu0 0.0
    %173 = vmatpush2.msra.mxu0 0.0
    %174 = vmatprep.subr.mxu0 0.0
    %175 = vmatpush2.msra.mxu0 0.0
    %176 = vmatprep.subr.mxu0 0.0
    %177 = vmatpush2.msra.mxu0 0.0
    %178 = vmatprep.subr.mxu0 0.0
    %179 = vmatpush2.msra.mxu0 0.0
    %180 = vmatprep.subr.mxu0 0.0
    %181 = vmatpush2.msra.mxu0 0.0
    %182 = vmatprep.subr.mxu0 0.0
    %183 = vmatpush2.msra.mxu0 0.0
    %184 = vmatprep.subr.mxu0 0.0
    %185 = vmatpush2.msra.mxu0 0.0
    %186 = vmatprep.subr.mxu0 0.0
    %187 = vmatpush2.msra.mxu0 0.0
    %188 = vmatprep.mubr.f32.mxu0 0.0
    %189 = vmatmul.mubr.f32.gmra.mxu0 %v119
    %v190 = vpop.f32.mrf.mxu0
    %v191 = vadd.f32 %v115, %v190
    %v192 = vpop.f32.mrf.mxu0
    %193 = vmatprep.mubr.f32.mxu0 0.0
    %194 = vmatmul.mubr.f32.gmra.mxu0 %v122
    %v195 = vpop.f32.mrf.mxu0
    %v196 = vadd.f32 %v115, %v195
    %v197 = vpop.f32.mrf.mxu0
    %198 = vdwg.mxu0
    %v199 = vmax.f32 %v191, 0.0
    %v200 = vmax.f32 %v196, 0.0
    %v201 = vld [vmem:[#allocation6] sm:$0xff]
    %v202 = vld [vmem:[#allocation6 + $0x8] sm:$0xff]
    %v203 = vld [vmem:[#allocation6 + $0x10] sm:$0xff]
    %v204 = vld [vmem:[#allocation6 + $0x18] sm:$0xff]
    %v205 = vld [vmem:[#allocation6 + $0x20] sm:$0xff]
    %v206 = vld [vmem:[#allocation6 + $0x28] sm:$0xff]
    %v207 = vld [vmem:[#allocation6 + $0x30] sm:$0xff]
    %v208 = vld [vmem:[#allocation6 + $0x38] sm:$0xff]
    %v209 = vld [vmem:[#allocation6 + $0x40] sm:$0xff]
    %v210 = vld [vmem:[#allocation6 + $0x48] sm:$0xff]
    %v211 = vld [vmem:[#allocation6 + $0x50] sm:$0xff]
    %v212 = vld [vmem:[#allocation6 + $0x58] sm:$0xff]
    %v213 = vld [vmem:[#allocation6 + $0x60] sm:$0xff]
    %v214 = vld [vmem:[#allocation6 + $0x68] sm:$0xff]
    %v215 = vld [vmem:[#allocation6 + $0x70] sm:$0xff]
    %v216 = vld [vmem:[#allocation6 + $0x78] sm:$0xff]
    %v217 = vld [vmem:[%s4] sm:$0x1]
    %v219 = vlaneseq
    %v220 = vshrl.u32 %v219, 7
    %v221 = vsub.s32 0, %v220
    %v222 = vrot.slane %v217, %v221
    %224 = vmatprep.subr.mxu0 0.0
    %225 = vmatpush1.msra.mxu0 %v216
    %226 = vmatprep.subr.mxu0 0.0
    %227 = vmatpush1.msra.mxu0 %v215
    %228 = vmatprep.subr.mxu0 0.0
    %229 = vmatpush1.msra.mxu0 %v214
    %230 = vmatprep.subr.mxu0 0.0
    %231 = vmatpush1.msra.mxu0 %v213
    %232 = vmatprep.subr.mxu0 0.0
    %233 = vmatpush1.msra.mxu0 %v212
    %234 = vmatprep.subr.mxu0 0.0
    %235 = vmatpush1.msra.mxu0 %v211
    %236 = vmatprep.subr.mxu0 0.0
    %237 = vmatpush1.msra.mxu0 %v210
    %238 = vmatprep.subr.mxu0 0.0
    %239 = vmatpush1.msra.mxu0 %v209
    %240 = vmatprep.subr.mxu0 0.0
    %241 = vmatpush1.msra.mxu0 %v208
    %242 = vmatprep.subr.mxu0 0.0
    %243 = vmatpush1.msra.mxu0 %v207
    %244 = vmatprep.subr.mxu0 0.0
    %245 = vmatpush1.msra.mxu0 %v206
    %246 = vmatprep.subr.mxu0 0.0
    %247 = vmatpush1.msra.mxu0 %v205
    %248 = vmatprep.subr.mxu0 0.0
    %249 = vmatpush1.msra.mxu0 %v204
    %250 = vmatprep.subr.mxu0 0.0
    %251 = vmatpush1.msra.mxu0 %v203
    %252 = vmatprep.subr.mxu0 0.0
    %253 = vmatpush1.msra.mxu0 %v202
    %254 = vmatprep.subr.mxu0 0.0
    %255 = vmatpush1.msra.mxu0 %v201
    %256 = vmatprep.subr.mxu0 0.0
    %257 = vmatpush2.msra.mxu0 0.0
    %258 = vmatprep.subr.mxu0 0.0
    %259 = vmatpush2.msra.mxu0 0.0
    %260 = vmatprep.subr.mxu0 0.0
    %261 = vmatpush2.msra.mxu0 0.0
    %262 = vmatprep.subr.mxu0 0.0
    %263 = vmatpush2.msra.mxu0 0.0
    %264 = vmatprep.subr.mxu0 0.0
    %265 = vmatpush2.msra.mxu0 0.0
    %266 = vmatprep.subr.mxu0 0.0
    %267 = vmatpush2.msra.mxu0 0.0
    %268 = vmatprep.subr.mxu0 0.0
    %269 = vmatpush2.msra.mxu0 0.0
    %270 = vmatprep.subr.mxu0 0.0
    %271 = vmatpush2.msra.mxu0 0.0
    %272 = vmatprep.subr.mxu0 0.0
    %273 = vmatpush2.msra.mxu0 0.0
    %274 = vmatprep.subr.mxu0 0.0
    %275 = vmatpush2.msra.mxu0 0.0
    %276 = vmatprep.subr.mxu0 0.0
    %277 = vmatpush2.msra.mxu0 0.0
    %278 = vmatprep.subr.mxu0 0.0
    %279 = vmatpush2.msra.mxu0 0.0
    %280 = vmatprep.subr.mxu0 0.0
    %281 = vmatpush2.msra.mxu0 0.0
    %282 = vmatprep.subr.mxu0 0.0
    %283 = vmatpush2.msra.mxu0 0.0
    %284 = vmatprep.subr.mxu0 0.0
    %285 = vmatpush2.msra.mxu0 0.0
    %286 = vmatprep.subr.mxu0 0.0
    %287 = vmatpush2.msra.mxu0 0.0
    %288 = vmatprep.mubr.f32.mxu0 0.0
    %289 = vmatmul.mubr.f32.gmra.mxu0 %v199
    %v290 = vpop.f32.mrf.mxu0
    %v291 = vadd.f32 %v222, %v290
    %v292 = vpop.f32.mrf.mxu0
    %293 = vmatprep.mubr.f32.mxu0 0.0
    %294 = vmatmul.mubr.f32.gmra.mxu0 %v200
    %v295 = vpop.f32.mrf.mxu0
    %v296 = vadd.f32 %v222, %v295
    %v297 = vpop.f32.mrf.mxu0
    %298 = vdwg.mxu0
    %v299 = vmax.f32 %v291, 0.0
    %v300 = vmax.f32 %v296, 0.0
    %v301 = vld [vmem:[#allocation7] sm:$0xff]
    %v302 = vld [vmem:[#allocation7 + $0x8] sm:$0xff]
    %v303 = vld [vmem:[#allocation7 + $0x10] sm:$0xff]
    %v304 = vld [vmem:[#allocation7 + $0x18] sm:$0xff]
    %v305 = vld [vmem:[#allocation7 + $0x20] sm:$0xff]
    %v306 = vld [vmem:[#allocation7 + $0x28] sm:$0xff]
    %v307 = vld [vmem:[#allocation7 + $0x30] sm:$0xff]
    %v308 = vld [vmem:[#allocation7 + $0x38] sm:$0xff]
    %v309 = vld [vmem:[#allocation7 + $0x40] sm:$0xff]
    %v310 = vld [vmem:[#allocation7 + $0x48] sm:$0xff]
    %v311 = vld [vmem:[#allocation7 + $0x50] sm:$0xff]
    %v312 = vld [vmem:[#allocation7 + $0x58] sm:$0xff]
    %v313 = vld [vmem:[#allocation7 + $0x60] sm:$0xff]
    %v314 = vld [vmem:[#allocation7 + $0x68] sm:$0xff]
    %v315 = vld [vmem:[#allocation7 + $0x70] sm:$0xff]
    %v316 = vld [vmem:[#allocation7 + $0x78] sm:$0xff]
    %v317 = vld [vmem:[%s6] sm:$0x1]
    %v319 = vlaneseq
    %v320 = vshrl.u32 %v319, 7
    %v321 = vsub.s32 0, %v320
    %v322 = vrot.slane %v317, %v321
    %324 = vmatprep.subr.mxu0 0.0
    %325 = vmatpush1.msra.mxu0 %v316
    %326 = vmatprep.subr.mxu0 0.0
    %327 = vmatpush1.msra.mxu0 %v315
    %328 = vmatprep.subr.mxu0 0.0
    %329 = vmatpush1.msra.mxu0 %v314
    %330 = vmatprep.subr.mxu0 0.0
    %331 = vmatpush1.msra.mxu0 %v313
    %332 = vmatprep.subr.mxu0 0.0
    %333 = vmatpush1.msra.mxu0 %v312
    %334 = vmatprep.subr.mxu0 0.0
    %335 = vmatpush1.msra.mxu0 %v311
    %336 = vmatprep.subr.mxu0 0.0
    %337 = vmatpush1.msra.mxu0 %v310
    %338 = vmatprep.subr.mxu0 0.0
    %339 = vmatpush1.msra.mxu0 %v309
    %340 = vmatprep.subr.mxu0 0.0
    %341 = vmatpush1.msra.mxu0 %v308
    %342 = vmatprep.subr.mxu0 0.0
    %343 = vmatpush1.msra.mxu0 %v307
    %344 = vmatprep.subr.mxu0 0.0
    %345 = vmatpush1.msra.mxu0 %v306
    %346 = vmatprep.subr.mxu0 0.0
    %347 = vmatpush1.msra.mxu0 %v305
    %348 = vmatprep.subr.mxu0 0.0
    %349 = vmatpush1.msra.mxu0 %v304
    %350 = vmatprep.subr.mxu0 0.0
    %351 = vmatpush1.msra.mxu0 %v303
    %352 = vmatprep.subr.mxu0 0.0
    %353 = vmatpush1.msra.mxu0 %v302
    %354 = vmatprep.subr.mxu0 0.0
    %355 = vmatpush1.msra.mxu0 %v301
    %356 = vmatprep.subr.mxu0 0.0
    %357 = vmatpush2.msra.mxu0 0.0
    %358 = vmatprep.subr.mxu0 0.0
    %359 = vmatpush2.msra.mxu0 0.0
    %360 = vmatprep.subr.mxu0 0.0
    %361 = vmatpush2.msra.mxu0 0.0
    %362 = vmatprep.subr.mxu0 0.0
    %363 = vmatpush2.msra.mxu0 0.0
    %364 = vmatprep.subr.mxu0 0.0
    %365 = vmatpush2.msra.mxu0 0.0
    %366 = vmatprep.subr.mxu0 0.0
    %367 = vmatpush2.msra.mxu0 0.0
    %368 = vmatprep.subr.mxu0 0.0
    %369 = vmatpush2.msra.mxu0 0.0
    %370 = vmatprep.subr.mxu0 0.0
    %371 = vmatpush2.msra.mxu0 0.0
    %372 = vmatprep.subr.mxu0 0.0
    %373 = vmatpush2.msra.mxu0 0.0
    %374 = vmatprep.subr.mxu0 0.0
    %375 = vmatpush2.msra.mxu0 0.0
    %376 = vmatprep.subr.mxu0 0.0
    %377 = vmatpush2.msra.mxu0 0.0
    %378 = vmatprep.subr.mxu0 0.0
    %379 = vmatpush2.msra.mxu0 0.0
    %380 = vmatprep.subr.mxu0 0.0
    %381 = vmatpush2.msra.mxu0 0.0
    %382 = vmatprep.subr.mxu0 0.0
    %383 = vmatpush2.msra.mxu0 0.0
    %384 = vmatprep.subr.mxu0 0.0
    %385 = vmatpush2.msra.mxu0 0.0
    %386 = vmatprep.subr.mxu0 0.0
    %387 = vmatpush2.msra.mxu0 0.0
    %388 = vmatprep.mubr.f32.mxu0 0.0
    %389 = vmatmul.mubr.f32.gmra.mxu0 %v299
    %v390 = vpop.f32.mrf.mxu0
    %v391 = vadd.f32 %v322, %v390
    %v392 = vpop.f32.mrf.mxu0
    %393 = vmatprep.mubr.f32.mxu0 0.0
    %394 = vmatmul.mubr.f32.gmra.mxu0 %v300
    %v395 = vpop.f32.mrf.mxu0
    %v396 = vadd.f32 %v322, %v395
    %v397 = vpop.f32.mrf.mxu0
    %398 = vdwg.mxu0
    %v399 = vld [vmem:[#allocation9] sm:$0xff]
    %v400 = vld [vmem:[#allocation9 + $0x8] sm:$0xff]
    %v401 = vld [vmem:[#allocation9 + $0x10] sm:$0xff]
    %v402 = vld [vmem:[#allocation9 + $0x18] sm:$0xff]
    %v403 = vld [vmem:[#allocation9 + $0x20] sm:$0xff]
    %v404 = vld [vmem:[#allocation9 + $0x28] sm:$0xff]
    %v405 = vld [vmem:[#allocation9 + $0x30] sm:$0xff]
    %v406 = vld [vmem:[#allocation9 + $0x38] sm:$0xff]
    %v407 = vld [vmem:[#allocation9 + $0x40] sm:$0xff]
    %v408 = vld [vmem:[#allocation9 + $0x48] sm:$0xff]
    %v409 = vld [vmem:[#allocation9 + $0x50] sm:$0xff]
    %v410 = vld [vmem:[#allocation9 + $0x58] sm:$0xff]
    %v411 = vld [vmem:[#allocation9 + $0x60] sm:$0xff]
    %v412 = vld [vmem:[#allocation9 + $0x68] sm:$0xff]
    %v413 = vld [vmem:[#allocation9 + $0x70] sm:$0xff]
    %v414 = vld [vmem:[#allocation9 + $0x78] sm:$0xff]
    %v415 = vld [vmem:[%s8] sm:$0x1]
    %v417 = vlaneseq
    %v418 = vshrl.u32 %v417, 7
    %v419 = vsub.s32 0, %v418
    %v420 = vrot.slane %v415, %v419
    %422 = vmatprep.subr.mxu0 0.0
    %423 = vmatpush1.msra.mxu0 %v414
    %424 = vmatprep.subr.mxu0 0.0
    %425 = vmatpush1.msra.mxu0 %v413
    %426 = vmatprep.subr.mxu0 0.0
    %427 = vmatpush1.msra.mxu0 %v412
    %428 = vmatprep.subr.mxu0 0.0
    %429 = vmatpush1.msra.mxu0 %v411
    %430 = vmatprep.subr.mxu0 0.0
    %431 = vmatpush1.msra.mxu0 %v410
    %432 = vmatprep.subr.mxu0 0.0
    %433 = vmatpush1.msra.mxu0 %v409
    %434 = vmatprep.subr.mxu0 0.0
    %435 = vmatpush1.msra.mxu0 %v408
    %436 = vmatprep.subr.mxu0 0.0
    %437 = vmatpush1.msra.mxu0 %v407
    %438 = vmatprep.subr.mxu0 0.0
    %439 = vmatpush1.msra.mxu0 %v406
    %440 = vmatprep.subr.mxu0 0.0
    %441 = vmatpush1.msra.mxu0 %v405
    %442 = vmatprep.subr.mxu0 0.0
    %443 = vmatpush1.msra.mxu0 %v404
    %444 = vmatprep.subr.mxu0 0.0
    %445 = vmatpush1.msra.mxu0 %v403
    %446 = vmatprep.subr.mxu0 0.0
    %447 = vmatpush1.msra.mxu0 %v402
    %448 = vmatprep.subr.mxu0 0.0
    %449 = vmatpush1.msra.mxu0 %v401
    %450 = vmatprep.subr.mxu0 0.0
    %451 = vmatpush1.msra.mxu0 %v400
    %452 = vmatprep.subr.mxu0 0.0
    %453 = vmatpush1.msra.mxu0 %v399
    %454 = vmatprep.subr.mxu0 0.0
    %455 = vmatpush2.msra.mxu0 0.0
    %456 = vmatprep.subr.mxu0 0.0
    %457 = vmatpush2.msra.mxu0 0.0
    %458 = vmatprep.subr.mxu0 0.0
    %459 = vmatpush2.msra.mxu0 0.0
    %460 = vmatprep.subr.mxu0 0.0
    %461 = vmatpush2.msra.mxu0 0.0
    %462 = vmatprep.subr.mxu0 0.0
    %463 = vmatpush2.msra.mxu0 0.0
    %464 = vmatprep.subr.mxu0 0.0
    %465 = vmatpush2.msra.mxu0 0.0
    %466 = vmatprep.subr.mxu0 0.0
    %467 = vmatpush2.msra.mxu0 0.0
    %468 = vmatprep.subr.mxu0 0.0
    %469 = vmatpush2.msra.mxu0 0.0
    %470 = vmatprep.subr.mxu0 0.0
    %471 = vmatpush2.msra.mxu0 0.0
    %472 = vmatprep.subr.mxu0 0.0
    %473 = vmatpush2.msra.mxu0 0.0
    %474 = vmatprep.subr.mxu0 0.0
    %475 = vmatpush2.msra.mxu0 0.0
    %476 = vmatprep.subr.mxu0 0.0
    %477 = vmatpush2.msra.mxu0 0.0
    %478 = vmatprep.subr.mxu0 0.0
    %479 = vmatpush2.msra.mxu0 0.0
    %480 = vmatprep.subr.mxu0 0.0
    %481 = vmatpush2.msra.mxu0 0.0
    %482 = vmatprep.subr.mxu0 0.0
    %483 = vmatpush2.msra.mxu0 0.0
    %484 = vmatprep.subr.mxu0 0.0
    %485 = vmatpush2.msra.mxu0 0.0
    %486 = vmatprep.mubr.f32.mxu0 0.0
    %487 = vmatmul.mubr.f32.gmra.mxu0 %v391
    %v488 = vpop.f32.mrf.mxu0
    %v489 = vadd.f32 %v420, %v488
    %v490 = vpop.f32.mrf.mxu0
    %491 = vmatprep.mubr.f32.mxu0 0.0
    %492 = vmatmul.mubr.f32.gmra.mxu0 %v396
    %v493 = vpop.f32.mrf.mxu0
    %v494 = vadd.f32 %v420, %v493
    %v495 = vpop.f32.mrf.mxu0
    %496 = vdwg.mxu0
    %497 = vst [vmem:[%s9] sm:$0xff] %v489
    %498 = vst [vmem:[%s9 + $0x8] sm:$0xff] %v494
    // Predicated region
    $region58: #{domainbed_net_forward.1} parent=1 // pred_check
      _
    $region59: #{domainbed_net_forward.1} parent=1 // pred_check_branch
      %500 = sbr.rel (0) target = $region61
    $region60: #{domainbed_net_forward.1} parent=1 // pred_region
      _
    $region61: #{domainbed_net_forward.1} parent=1 // pred_fallthru
      _
    // Predicated region
    $region62: #{domainbed_net_forward.1} parent=1 // pred_check
      _
    $region63: #{domainbed_net_forward.1} parent=1 // pred_check_branch
      %502 = sbr.rel (0) target = $region65
    $region64: #{domainbed_net_forward.1} parent=1 // pred_region
      _
    $region65: #{domainbed_net_forward.1} parent=1 // pred_fallthru
      _
    %503 = vsyncpa [#allocation3], 1
    %504 = vsyncpa [#allocation5], 1
    %505 = vsyncpa [#allocation8], 1

</llo_original>
